<compile_context>
chip_gen: v7x
topology: tpu7x:2x2x1
jax: 0.10.0
libtpu: 0.0.40
codegen_flags: <defaults>
</compile_context>

<pallas_src>
import functools

import jax
import jax.numpy as jnp
from jax.experimental import pallas as pl
from jax.experimental.pallas import tpu as pltpu

NUM_CLASSES = 19                    # labels >= 19 are "ignore" in the reference
_TARGET_TILE_ELEMS = 1024 * 1024    # ~4 MiB per int32/f32 tile


def _fused_kernel(lab_ref, mask_ref, flag_ref, *, valid_bits):
    """Fused pass: write mask = (lab < 19) and accumulate the per-core flag
    "some pixel has a present class < 19 that is not in valid_cls"."""
    @pl.when(pl.program_id(1) == 0)
    def _():
        flag_ref[...] = jnp.zeros_like(flag_ref)

    lab = lab_ref[...].astype(jnp.int32)     # in-VMEM cast, no extra HBM pass
    lt = lab < NUM_CLASSES
    mask_ref[...] = lt.astype(jnp.float32)

    # Static bitmask membership test (only classes 0..18 matter).
    safe = jnp.clip(lab, 0, 31)
    is_valid = jnp.logical_and(((valid_bits >> safe) & 1) == 1, lab >= 0)
    invalid_present = jnp.logical_and(lt, jnp.logical_not(is_valid))
    tile_flag = jnp.max(invalid_present.astype(jnp.int32))      # any() via max
    flag_ref[...] = jnp.maximum(flag_ref[...], tile_flag)


def _layout(n, row_mult):
    """Pick a lane-dense (rows, lane) layout, a row-tile size, and the number
    of leading 'core' grid slots.  Prefers exact factorizations (no padding)
    and an even tile count (so the pass shards across v7x's 2 TensorCores)."""
    # Largest lane width (multiple of 128, <= 4096) dividing n exactly.
    lane = 128
    for cand in range(4096, 127, -128):
        if n % cand == 0:
            lane = cand
            break
    rows = -(-n // lane)                                 # exact when lane | n

    target_r = max(row_mult,
                   (_TARGET_TILE_ELEMS // lane) // row_mult * row_mult)
    if rows <= target_r:
        # Single tile: (8,128) rule satisfied via the full-dim exemption.
        return lane, rows, rows, 1

    # Largest divisor of rows that is a multiple of row_mult and <= target_r;
    # prefer one giving an even tile count if it costs <= 2x smaller tiles.
    best, best_even = 0, 0
    t = target_r
    while t >= row_mult and best_even == 0:
        if rows % t == 0:
            if best == 0:
                best = t
            if (rows // t) % 2 == 0:
                best_even = t
        t -= row_mult
    if best_even and best_even * 2 >= best:
        tile_r = best_even
    elif best:
        tile_r = best
    else:
        tile_r = target_r                                # fall back to padding

    rows_padded = -(-rows // tile_r) * tile_r
    num_tiles = rows_padded // tile_r
    num_cores = 2 if (num_tiles >= 2 and num_tiles % 2 == 0) else 1
    return lane, rows_padded, tile_r, num_cores


@functools.partial(jax.jit, static_argnums=(1,))
def sampler_forward(label, valid_cls):
    """JAX/Pallas equivalent of sampler(valid_cls).forward(label)."""
    B, H, W = label.shape
    n = B * H * W

    lab_flat = label.reshape(n)
    dt = lab_flat.dtype
    if (not jnp.issubdtype(dt, jnp.integer)) or dt.itemsize > 4:
        lab_flat = lab_flat.astype(jnp.int32)            # rare fallback only
        dt = lab_flat.dtype
    # Sublane pack factor by dtype: int32 -> 8, int16 -> 16, int8/uint8 -> 32.
    row_mult = max(8, 32 // dt.itemsize)

    lane, rows_padded, tile_r, num_cores = _layout(n, row_mult)
    n_padded = rows_padded * lane
    if n_padded != n:
        # Pad with an "ignore" label (>= 19): does not affect the flag; padded
        # mask values are sliced off below.  The layout search avoids this path
        # whenever an exact factorization exists.
        pad = jnp.full((n_padded - n,), NUM_CLASSES, dtype=dt)
        lab_flat = jnp.concatenate([lab_flat, pad])
    lab2d = lab_flat.reshape(rows_padded, lane)

    num_tiles = rows_padded // tile_r
    tiles_per_core = num_tiles // num_cores

    # Static bitmask of valid classes (only 0..18 matter in the reference).
    valid_bits = 0
    for v in valid_cls:
        v = int(v)
        if 0 <= v < NUM_CLASSES:
            valid_bits |= 1 << v

    mask_lt, flag = pl.pallas_call(
        functools.partial(_fused_kernel, valid_bits=valid_bits),
        out_shape=(
            jax.ShapeDtypeStruct((rows_padded, lane), jnp.float32),
            jax.ShapeDtypeStruct((8 * num_cores, 128), jnp.int32),
        ),
        grid=(num_cores, tiles_per_core),
        in_specs=[
            pl.BlockSpec((tile_r, lane),
                         lambda c, i: (c * tiles_per_core + i, 0)),
        ],
        out_specs=(
            pl.BlockSpec((tile_r, lane),
                         lambda c, i: (c * tiles_per_core + i, 0)),
            pl.BlockSpec((8, 128), lambda c, i: (c, 0)),   # per-core accumulator
        ),
        compiler_params=pltpu.CompilerParams(
            dimension_semantics=("parallel", "arbitrary"),
            vmem_limit_bytes=32 * 1024 * 1024,
        ),
    )(lab2d)

    has_invalid = jnp.max(flag) > 0
    # Conditional write-only ones fill: only one branch runs at runtime; the
    # common (invalid-class-present) case returns the fused mask untouched.
    mask2d = jax.lax.cond(has_invalid,
                          lambda m: m,
                          lambda m: jnp.ones_like(m),
                          mask_lt)

    mask_flat = mask2d.reshape(n_padded)
    if n_padded != n:
        mask_flat = mask_flat[:n]

    # TODO(synk): the reference uses integer fancy-indexing `mask[scls_] = 1`
    # (which actually indexes rows 0/1 of mask); we implement the intended
    # per-pixel boolean masking instead.
    # TODO(synk): the random-subsample branch (`len(scls_)*8 < len(lcls_)`)
    # compares equal first-dim lengths and is unreachable in the reference, so
    # it is not implemented.
    return mask_flat.reshape(B, H, W)


if __name__ == "__main__":
    # Deterministic module "parameter" (the valid class subset).
    valid_cls = (0, 1, 2, 5, 8, 13)

    key = jax.random.PRNGKey(0)
    # Small label map: batch=2, H=16, W=16.  Values in [0, 25) so some labels
    # are >= 19 (ignored) and some present classes fall outside valid_cls,
    # exercising the non-trivial branch.
    label = jax.random.randint(key, (2, 16, 16), minval=0, maxval=25,
                               dtype=jnp.int32)

    mask = sampler_forward(label, valid_cls)
    mask = jax.block_until_ready(mask)

    assert mask.shape == label.shape
    assert mask.dtype == jnp.float32
    # Sanity: values are only 0.0 / 1.0
    assert bool(jnp.all((mask == 0.0) | (mask == 1.0)))

    # Cross-check against a pure-JAX reference of the intended semantics.
    lt = label < NUM_CLASSES
    is_valid = jnp.isin(label, jnp.array(valid_cls, dtype=jnp.int32))
    has_invalid = jnp.any(lt & ~is_valid)
    expected = jnp.where(has_invalid, lt.astype(jnp.float32),
                         jnp.ones(label.shape, jnp.float32))
    assert bool(jnp.all(mask == expected))

    # Also exercise the "all present classes valid" branch (mask must be ones).
    label2 = jnp.where(is_valid, label, NUM_CLASSES)
    mask2 = jax.block_until_ready(sampler_forward(label2, valid_cls))
    assert bool(jnp.all(mask2 == 1.0))

    print("KERNEL_OK")
</pallas_src>

<mosaic_0001>
module attributes {stable_mosaic.version = 11 : i64} {
  func.func @_fused_kernel(%arg0: i32, %arg1: i32, %arg2: memref<1x512xi32, #tpu.memory_space<vmem>>, %arg3: memref<1x512xf32, #tpu.memory_space<vmem>>, %arg4: memref<8x128xi32, #tpu.memory_space<vmem>>) attributes {dimension_semantics = [#tpu.dimension_semantics<parallel>, #tpu.dimension_semantics<arbitrary>], iteration_bounds = array<i64: 1, 1>, scalar_prefetch = 0 : i64, scratch_operands = 0 : i64, tpu.core_type = #tpu.core_type<tc>, window_params = [{transform_indices = @transform_0, window_bounds = array<i64: 1, 512>}, {transform_indices = @transform_1, window_bounds = array<i64: 1, 512>}, {transform_indices = @transform_2, window_bounds = array<i64: 8, 128>}]} {
    %c0_i32 = arith.constant 0 : i32
    %0 = arith.cmpi eq, %arg1, %c0_i32 : i32
    %1 = arith.extui %0 : i1 to i32
    %c0_i32_0 = arith.constant 0 : i32
    %2 = arith.cmpi ne, %1, %c0_i32_0 : i32
    scf.if %2 {
      %c0_i32_12 = arith.constant 0 : i32
      %33 = vector.broadcast %c0_i32_12 : i32 to vector<8x128xi32>
      %c0_13 = arith.constant 0 : index
      %c0_14 = arith.constant 0 : index
      %34 = vector.load %arg4[%c0_13, %c0_14] : memref<8x128xi32, #tpu.memory_space<vmem>>, vector<8x128xi32>
      tpu.vector_store %arg4[%c0_13, %c0_14], %33 {strides = array<i32>} : memref<8x128xi32, #tpu.memory_space<vmem>>, vector<8x128xi32>,
    } else {
    }
    %c0 = arith.constant 0 : index
    %c0_1 = arith.constant 0 : index
    %3 = vector.load %arg2[%c0, %c0_1] : memref<1x512xi32, #tpu.memory_space<vmem>>, vector<1x512xi32>
    %c19_i32 = arith.constant 19 : i32
    %4 = vector.broadcast %c19_i32 : i32 to vector<1x512xi32>
    %5 = arith.cmpi slt, %3, %4 : vector<1x512xi32>
    %6 = arith.extui %5 : vector<1x512xi1> to vector<1x512xi32>
    %7 = arith.sitofp %6 : vector<1x512xi32> to vector<1x512xf32>
    %c0_2 = arith.constant 0 : index
    %c0_3 = arith.constant 0 : index
    %8 = vector.load %arg3[%c0_2, %c0_3] : memref<1x512xf32, #tpu.memory_space<vmem>>, vector<1x512xf32>
    tpu.vector_store %arg3[%c0_2, %c0_3], %7 {strides = array<i32>} : memref<1x512xf32, #tpu.memory_space<vmem>>, vector<1x512xf32>,
    %c0_i32_4 = arith.constant 0 : i32
    %c31_i32 = arith.constant 31 : i32
    %9 = vector.broadcast %c0_i32_4 : i32 to vector<1x512xi32>
    %10 = arith.maxsi %9, %3 : vector<1x512xi32>
    %11 = vector.broadcast %c31_i32 : i32 to vector<1x512xi32>
    %12 = arith.minsi %11, %10 : vector<1x512xi32>
    %c8487_i32 = arith.constant 8487 : i32
    %13 = vector.broadcast %c8487_i32 : i32 to vector<1x512xi32>
    %14 = arith.shrsi %13, %12 : vector<1x512xi32>
    %c1_i32 = arith.constant 1 : i32
    %15 = vector.broadcast %c1_i32 : i32 to vector<1x512xi32>
    %16 = arith.andi %14, %15 : vector<1x512xi32>
    %c1_i32_5 = arith.constant 1 : i32
    %17 = vector.broadcast %c1_i32_5 : i32 to vector<1x512xi32>
    %18 = arith.cmpi eq, %16, %17 : vector<1x512xi32>
    %c0_i32_6 = arith.constant 0 : i32
    %19 = vector.broadcast %c0_i32_6 : i32 to vector<1x512xi32>
    %20 = arith.cmpi sge, %3, %19 : vector<1x512xi32>
    %21 = arith.andi %18, %20 : vector<1x512xi1>
    %cst = arith.constant dense<true> : vector<1x512xi1>
    %22 = arith.xori %21, %cst : vector<1x512xi1>
    %23 = arith.andi %5, %22 : vector<1x512xi1>
    %24 = arith.extui %23 : vector<1x512xi1> to vector<1x512xi32>
    %25 = vector.shape_cast %24 : vector<1x512xi32> to vector<1x1x512xi32>
    %cst_7 = arith.constant dense<-2147483648> : vector<1xi32>
    %26 = vector.multi_reduction <maxsi>, %25, %cst_7 [1, 2] : vector<1x1x512xi32> to vector<1xi32>
    %27 = vector.shape_cast %26 : vector<1xi32> to vector<1x1x1xi32>
    %28 = vector.extract %27[0, 0, 0] : i32 from vector<1x1x1xi32>
    %c0_8 = arith.constant 0 : index
    %c0_9 = arith.constant 0 : index
    %29 = vector.load %arg4[%c0_8, %c0_9] : memref<8x128xi32, #tpu.memory_space<vmem>>, vector<8x128xi32>
    %30 = vector.broadcast %28 : i32 to vector<8x128xi32>
    %31 = arith.maxsi %29, %30 : vector<8x128xi32>
    %c0_10 = arith.constant 0 : index
    %c0_11 = arith.constant 0 : index
    %32 = vector.load %arg4[%c0_10, %c0_11] : memref<8x128xi32, #tpu.memory_space<vmem>>, vector<8x128xi32>
    tpu.vector_store %arg4[%c0_10, %c0_11], %31 {strides = array<i32>} : memref<8x128xi32, #tpu.memory_space<vmem>>, vector<8x128xi32>,
    return
  }
  func.func @transform_0(%arg0: i32, %arg1: i32) -> (i32, i32) {
    %c1_i32 = arith.constant 1 : i32
    %0 = arith.muli %arg0, %c1_i32 : i32
    %1 = arith.addi %0, %arg1 : i32
    %c0_i32 = arith.constant 0 : i32
    %c0_i32_0 = arith.constant 0 : i32
    return %1, %c0_i32 : i32, i32
  }
  func.func @transform_1(%arg0: i32, %arg1: i32) -> (i32, i32) {
    %c1_i32 = arith.constant 1 : i32
    %0 = arith.muli %arg0, %c1_i32 : i32
    %1 = arith.addi %0, %arg1 : i32
    %c0_i32 = arith.constant 0 : i32
    %c0_i32_0 = arith.constant 0 : i32
    return %1, %c0_i32 : i32, i32
  }
  func.func @transform_2(%arg0: i32, %arg1: i32) -> (i32, i32) {
    %c0_i32 = arith.constant 0 : i32
    %c0_i32_0 = arith.constant 0 : i32
    return %arg0, %c0_i32 : i32, i32
  }
}

</mosaic_0001>

<llo_original>
// kernel: sampler_forward.1
$region0: #{sampler_forward.1}
  #allocation0 [shape = 'u32[]', space=smem, size = 0x4, offset = 0x4, fixed_abs, tag = 'smem constant byte address 0x4 - core index']
  #allocation1 [shape = 'u32[144,128]{1,0:T(1,128)}', space=vmem, size = 0x12000, scoped, tag = 'internal scratch']
  %s0 = inlined_call_operand.vmem [shape: s32[1,512], index: 0, kind: input, shape index: {}]
  %s1 = inlined_call_operand.vmem [shape: f32[1,512], index: 1, kind: output, shape index: {0}]
  %s2 = inlined_call_operand.vmem [shape: s32[8,128], index: 2, kind: output, shape index: {1}]
  %3 = xla_tuple %s1, %s2
  %s4 = sld [smem:[#allocation0]]
  $region26: #{sampler_forward.1} parent=0
    _
  %s6 = ssub.s32 1, %s4
  %s7 = scalar_select 0, %s6, %s4
  // Predicated region
  $region2: #{sampler_forward.1} parent=0 // pred_check
    _
  $region3: #{sampler_forward.1} parent=0 // pred_check_branch
    %9 = sbr.rel (0) target = $region5
  $region4: #{sampler_forward.1} parent=0 // pred_region
    %s10 = sadd.s32 0, 0
    %p11 = scmp.lt.s32.totalorder %s10, 0
    %s12 = scalar_select %p11, %s10, 0
    %s13 = smul.addr %s12, 4
    %s14 = scalar_lea.vmem %s0, %s13
    %s15 = sadd.s32 0, 0
  $region5: #{sampler_forward.1} parent=0 // pred_fallthru
    _
  %s16 = sadd.s32 0, 0
  %p17 = scmp.lt.s32.totalorder %s16, 0
  %s18 = scalar_select %p17, %s16, 0
  %s19 = smul.addr %s18, 4
  %s20 = scalar_lea.vmem %s0, %s19
  %s21 = sadd.s32 0, 0
  %p22 = scmp.lt.s32.totalorder %s21, 0
  %s23 = scalar_select %p22, %s21, 0
  %s24 = smul.addr %s23, 4
  %s25 = scalar_lea.vmem %s1, %s24
  %s26 = sadd.s32 0, 0
  %p27 = scmp.lt.s32.totalorder %s26, 0
  %s28 = scalar_select %p27, %s26, 0
  %s29 = smul.addr %s28, 4
  %s30 = scalar_lea.vmem %s0, %s29
  %s31 = sadd.s32 0, 0
  %s32 = sadd.s32 0, 0
  %p33 = scmp.lt.s32.totalorder %s32, 0
  %s34 = scalar_select %p33, %s32, 0
  %s35 = smul.addr %s34, 4
  %s36 = scalar_lea.vmem %s1, %s35
  %s37 = sadd.s32 0, 0
  %p38 = scmp.eq.s32.totalorder 0, 0
  // Predicated region
  $region6: #{sampler_forward.1} parent=0 // pred_check
    %p39 = pneg %p38
  $region7: #{sampler_forward.1} parent=0 // pred_check_branch
    %41 = sbr.rel (%p39) target = $region9
  $region8: #{sampler_forward.1} parent=0 // pred_region
    %42 = vst [vmem:[%s2] sm:$0xff] 0
  $region9: #{sampler_forward.1} parent=0 // pred_fallthru
    _
  %v43 = vld [vmem:[%s30] sm:$0xf]
  %vm44 = vcmp.lt.s32.totalorder %v43, 19
  %v45 = vsel %vm44, 1, 0
  %v46 = vcvt.s32.f32 %v45
  %v47 = vlaneseq
  %vm48 = vcmp.ge.s32.totalorder %v47, 0
  %vm49 = vcmp.lt.s32.totalorder %v47, 512
  %vm50 = vmand %vm48, %vm49
  %51 = vst.msk [vmem:[%s36] sm:$0xf] %vm50, %v46
  %vm52 = vcmp.gt.s32.totalorder %v43, 0
  %v53 = vsel %vm52, %v43, 0
  %vm54 = vcmp.lt.s32.totalorder %v53, 31
  %v55 = vsel %vm54, %v53, 31
  %v56 = vshra.s32 8487, %v55
  %v57 = vand.u32 %v56, 1
  %vm58 = vcmp.eq.s32.totalorder %v57, 1
  %vm59 = vcmp.ge.s32.totalorder %v43, 0
  %vm60 = vmand %vm58, %vm59
  %vm61 = vmxor %vm60, 1
  %vm62 = vmand %vm44, %vm61
  %v63 = vsel %vm62, 1, 0
  %v64 = vlaneseq
  %v65 = vshrl.u32 %v64, 7
  %v66 = vsub.s32 0, %v65
  %v67 = vrot.slane %v63, %v66
  %v68 = vlaneseq
  %v69 = vshrl.u32 %v68, 7
  %v70 = vsub.s32 1, %v69
  %v71 = vrot.slane %v63, %v70
  %v72 = vlaneseq
  %v73 = vshrl.u32 %v72, 7
  %v74 = vsub.s32 2, %v73
  %v75 = vrot.slane %v63, %v74
  %v76 = vlaneseq
  %v77 = vshrl.u32 %v76, 7
  %v78 = vsub.s32 3, %v77
  %v79 = vrot.slane %v63, %v78
  %vm80 = vcmask 1040384
  %v81 = vsel %vm80, %v67, 2147483648
  %v82 = vsel %vm80, %v71, 2147483648
  %v83 = vsel %vm80, %v75, 2147483648
  %v84 = vsel %vm80, %v79, 2147483648
  %vm85 = vcmp.gt.s32.totalorder %v81, %v82
  %v86 = vsel %vm85, %v81, %v82
  %vm87 = vcmp.gt.s32.totalorder %v83, %v84
  %v88 = vsel %vm87, %v83, %v84
  %vm89 = vcmp.gt.s32.totalorder %v86, %v88
  %v90 = vsel %vm89, %v86, %v88
  %v91 = vand.u32 %v90, 65535
  %v92 = vshra.s32 %v90, 16
  %v93 = vcvt.s32.f32 %v91
  %v94 = vcvt.s32.f32 %v92
  %95 = vmax.xlane.f32.xlu0 %v94
  %v96 = vpop.xlane.xlu0 %95
  %vm97 = vcmp.eq.f32.partialorder %v94, %v96
  %v98 = vsel %vm97, %v93, -inf
  %99 = vmax.xlane.f32.xlu0 %v98
  %v100 = vpop.xlane.xlu0 %99
  %v101 = vcvt.f32.s32 %v100
  %v102 = vcvt.f32.s32 %v96
  %v103 = vshll.u32 %v102, 16
  %v104 = vadd.s32 %v103, %v101
  %v105 = vrot.slane %v104, 4
  %vm106 = vcmp.gt.s32.totalorder %v104, %v105
  %v107 = vsel %vm106, %v104, %v105
  %v108 = vrot.slane %v107, 2
  %vm109 = vcmp.gt.s32.totalorder %v107, %v108
  %v110 = vsel %vm109, %v107, %v108
  %v111 = vrot.slane %v110, 1
  %vm112 = vcmp.gt.s32.totalorder %v110, %v111
  %v113 = vsel %vm112, %v110, %v111
  %s114 = vtos %v113
  %v115 = vld [vmem:[%s2] sm:$0xff]
  %v116 = vstv %s114
  %vm117 = vcmp.gt.s32.totalorder %v115, %v116
  %v118 = vsel %vm117, %v115, %v116
  %119 = vst [vmem:[%s2] sm:$0xff] %v118
  %s120 = sadd.s32 0, 0
  %p121 = scmp.lt.s32.totalorder %s120, 0
  %s122 = scalar_select %p121, %s120, 0
  %s123 = smul.addr %s122, 4
  %s124 = scalar_lea.vmem %s1, %s123
  // Predicated region
  $region10: #{sampler_forward.1} parent=0 // pred_check
    _
  $region11: #{sampler_forward.1} parent=0 // pred_check_branch
    %126 = sbr.rel (0) target = $region13
  $region12: #{sampler_forward.1} parent=0 // pred_region
    %s127 = sadd.s32 0, 0
  $region13: #{sampler_forward.1} parent=0 // pred_fallthru
    _
  // Predicated region
  $region14: #{sampler_forward.1} parent=0 // pred_check
    _
  $region15: #{sampler_forward.1} parent=0 // pred_check_branch
    %129 = sbr.rel (0) target = $region17
  $region16: #{sampler_forward.1} parent=0 // pred_region
    _
  $region17: #{sampler_forward.1} parent=0 // pred_fallthru
    _
  // Predicated region
  $region18: #{sampler_forward.1} parent=0 // pred_check
    _
  $region19: #{sampler_forward.1} parent=0 // pred_check_branch
    %131 = sbr.rel (0) target = $region21
  $region20: #{sampler_forward.1} parent=0 // pred_region
    %s132 = sadd.s32 0, 0
    %p133 = scmp.lt.s32.totalorder %s132, 0
    %s134 = scalar_select %p133, %s132, 0
    %s135 = smul.addr %s134, 4
    %s136 = scalar_lea.vmem %s1, %s135
  $region21: #{sampler_forward.1} parent=0 // pred_fallthru
    _
  // Predicated region
  $region22: #{sampler_forward.1} parent=0 // pred_check
    _
  $region23: #{sampler_forward.1} parent=0 // pred_check_branch
    %138 = sbr.rel (0) target = $region25
  $region24: #{sampler_forward.1} parent=0 // pred_region
    _
  $region25: #{sampler_forward.1} parent=0 // pred_fallthru
    _

</llo_original>
